<compile_context>
chip_gen: v7x
topology: tpu7x:2x2x1
jax: 0.10.0
libtpu: 0.0.40
codegen_flags: <defaults>
</compile_context>

<pallas_src>
import functools

import jax
import jax.numpy as jnp
from jax import lax
from jax.experimental import pallas as pl
from jax.experimental.pallas import tpu as pltpu


def _contrastive_kernel(temp_ref, img_ref, txt_ref, loss_i_ref, loss_t_ref,
                        *scratch, inv_b, mm_dtype, resident):
    if resident:
        (img_cache, txt_cache, m_r_ref, l_r_ref, col_m_ref, col_s_ref,
         acc_lser_ref, acc_lsec_ref, acc_diag_ref) = scratch
    else:
        (img_cache, m_r_ref, l_r_ref, col_m_ref, col_s_ref,
         acc_lser_ref, acc_lsec_ref, acc_diag_ref) = scratch

    qi = pl.program_id(0)          # image (row) block
    ki = pl.program_id(1)          # text  (column) block -- row-reduction axis
    nq = pl.num_programs(0)
    nk = pl.num_programs(1)
    t = img_ref.shape[0]

    inv_temp = 1.0 / temp_ref[0]

    # ---- init persistent scalar accumulators (first grid step) --------------
    @pl.when(jnp.logical_and(qi == 0, ki == 0))
    def _init_acc():
        zero = jnp.zeros((1, 1), jnp.float32)
        acc_lser_ref[...] = zero
        acc_lsec_ref[...] = zero
        acc_diag_ref[...] = zero

    # ---- per-row-block work (ki == 0): row stats + normalized/scaled img ----
    @pl.when(ki == 0)
    def _init_rows():
        m_r_ref[...] = jnp.full((t, 1), -jnp.inf, jnp.float32)
        l_r_ref[...] = jnp.zeros((t, 1), jnp.float32)
        img = img_ref[...].astype(jnp.float32)
        # No eps: matches `x / x.norm(dim=-1, keepdim=True)` exactly.
        # 1/temperature folded into the image scaling -> no O(b^2) divide.
        img_s = img * (lax.rsqrt(jnp.sum(img * img, axis=-1, keepdims=True))
                       * inv_temp)
        img_cache[...] = img_s.astype(mm_dtype)

    # ---- per-column-block init (qi == 0): col stats (+ resident txt panel) ---
    @pl.when(qi == 0)
    def _init_cols():
        col_m_ref[ki] = jnp.full((1, t), -jnp.inf, jnp.float32)
        col_s_ref[ki] = jnp.zeros((1, t), jnp.float32)

    if resident:
        @pl.when(qi == 0)
        def _fill_txt():
            txt = txt_ref[...].astype(jnp.float32)
            txt_n = txt * lax.rsqrt(jnp.sum(txt * txt, axis=-1, keepdims=True))
            txt_cache[ki] = txt_n.astype(mm_dtype)
        rhs = txt_cache[ki]                                      # (t, d) from VMEM
    else:
        txt = txt_ref[...].astype(jnp.float32)
        txt_n = txt * lax.rsqrt(jnp.sum(txt * txt, axis=-1, keepdims=True))
        rhs = txt_n.astype(mm_dtype)

    lhs = img_cache[...]                                         # (t, d)

    # ---- logits tile on the MXU (f32 accumulation) ---------------------------
    s = lax.dot_general(lhs, rhs, (((1,), (1,)), ((), ())),
                        preferred_element_type=jnp.float32)      # (t, t)

    # ---- diagonal logits[i,i] (diagonal blocks only; no iota / O(b^2) mask) --
    @pl.when(qi == ki)
    def _diag():
        acc_diag_ref[...] += jnp.sum(
            lhs.astype(jnp.float32) * rhs.astype(jnp.float32), keepdims=True)

    # ---- row-wise online softmax (flash style); exp() issued once per tile ---
    m_old = m_r_ref[...]                                         # (t, 1)
    m_new = jnp.maximum(m_old, jnp.max(s, axis=-1, keepdims=True))
    alpha = jnp.exp(m_old - m_new)
    p = jnp.exp(s - m_new)                                       # only O(t^2) exp
    l_new = alpha * l_r_ref[...] + jnp.sum(p, axis=-1, keepdims=True)
    m_r_ref[...] = m_new
    l_r_ref[...] = l_new

    # ---- column-wise online logsumexp, reusing p (O(t) extra exps) -----------
    # NOTE: single per-tile max (not per-column); robust for |logit|<=1/temp.
    # If the post-memory-fix bundle shows the XLU binding, move these two sums
    # to the MXU (p @ ones / ones @ (p*w)); if EUP binds on v6e/v7x, exp in bf16.
    m_tile = jnp.max(m_new)                                      # scalar >= max(s)
    w = jnp.exp(m_new - m_tile)                                  # (t, 1)
    colsum = jnp.sum(p * w, axis=0, keepdims=True)               # (1, t)
    c_m_old = col_m_ref[ki]
    c_s_old = col_s_ref[ki]
    c_m_new = jnp.maximum(c_m_old, m_tile)
    c_s_new = (c_s_old * jnp.exp(c_m_old - c_m_new)
               + colsum * jnp.exp(m_tile - c_m_new))
    col_m_ref[ki] = c_m_new
    col_s_ref[ki] = c_s_new

    # ---- finalize a row block after its last column tile ---------------------
    @pl.when(ki == nk - 1)
    def _fin_rows():
        acc_lser_ref[...] += jnp.sum(m_new + jnp.log(l_new), keepdims=True)

    # ---- finalize a column block after the last row tile ---------------------
    @pl.when(qi == nq - 1)
    def _fin_cols():
        acc_lsec_ref[...] += jnp.sum(c_m_new + jnp.log(c_s_new), keepdims=True)

    # ---- emit both scalar losses on the very last grid step ------------------
    @pl.when(jnp.logical_and(qi == nq - 1, ki == nk - 1))
    def _emit():
        loss_i_ref[...] = (acc_lser_ref[...] - acc_diag_ref[...]) * inv_b
        loss_t_ref[...] = (acc_lsec_ref[...] - acc_diag_ref[...]) * inv_b


def contrastive_loss_with_temperature(image_embeds, text_embeds, temperature, *,
                                      block_b=1024, use_bf16_matmul=True,
                                      txt_resident_budget_bytes=24 << 20,
                                      vmem_limit_bytes=None):
    """Returns (loss_i, loss_t) as f32 scalars, matching the PyTorch forward."""
    b, d = image_embeds.shape
    assert text_embeds.shape == (b, d)

    t = min(block_b, b)
    assert b % t == 0, "batch must be divisible by the block size"
    assert t == b or t % 8 == 0, "block size must be a multiple of 8"
    n = b // t

    # bf16 streaming + bf16 MXU inputs (f32 accumulation): halves HBM bytes of
    # the dominant stream; normalization still runs in f32 inside the kernel.
    mm_dtype = jnp.bfloat16 if use_bf16_matmul else jnp.float32
    img_in = image_embeds.astype(mm_dtype)
    txt_in = text_embeds.astype(mm_dtype)
    in_itemsize = jnp.dtype(mm_dtype).itemsize

    # Resident normalized text panel if it fits the (generation-specific) budget:
    # default ~24 MiB targets v6e's 128 MiB VMEM; shrink for v7x (64 MiB physical)
    # or v5e (16 MiB default scoped) if the surrounding program needs VMEM.
    resident = (n > 1) and (b * d * in_itemsize <= txt_resident_budget_bytes)

    temp_arr = jnp.asarray([temperature], dtype=jnp.float32)
    kernel = functools.partial(_contrastive_kernel,
                               inv_b=1.0 / float(b),
                               mm_dtype=mm_dtype,
                               resident=resident)

    scratch_shapes = [pltpu.VMEM((t, d), mm_dtype)]              # cached img_s tile
    if resident:
        scratch_shapes.append(pltpu.VMEM((n, t, d), mm_dtype))   # resident txt_n panel
    scratch_shapes += [
        pltpu.VMEM((t, 1), jnp.float32),      # running row max
        pltpu.VMEM((t, 1), jnp.float32),      # running row sum
        pltpu.VMEM((n, 1, t), jnp.float32),   # running col max (per column block)
        pltpu.VMEM((n, 1, t), jnp.float32),   # running col sum (per column block)
        pltpu.VMEM((1, 1), jnp.float32),      # sum of row LSE
        pltpu.VMEM((1, 1), jnp.float32),      # sum of col LSE
        pltpu.VMEM((1, 1), jnp.float32),      # sum of diag logits
    ]

    if resident:
        # After the first row-block pass the index pins to block 0, so Pallas
        # streams the text panel from HBM exactly once; later passes read the
        # normalized panel from the VMEM scratch instead.
        txt_index_map = lambda qi, ki: (jnp.where(qi == 0, ki, 0), 0)
    else:
        txt_index_map = lambda qi, ki: (ki, 0)

    # VMEM footprint estimate: double-buffered input tiles + caches + (t,t) f32.
    est_vmem = (2 * 2 * t * d * in_itemsize
                + t * d * in_itemsize
                + (b * d * in_itemsize if resident else 0)
                + 2 * t * t * 4
                + 4 * n * t * 4 + 8 * t * 4 + (1 << 20))
    if vmem_limit_bytes is None:
        # Cap below v7x's 64 MiB physical VMEM; v5e/v6e have 128 MiB physical.
        vmem_limit_bytes = min(56 << 20, max(32 << 20, int(est_vmem * 1.4)))

    # Real HBM traffic: img streamed once, txt once if resident else n times.
    cost = pl.CostEstimate(
        flops=int(2 * b * b * d + 6 * b * b + 8 * b * d),
        transcendentals=int(b * b + 8 * b),
        bytes_accessed=int(b * d * in_itemsize * (1 + (1 if resident else n)) + 16),
    )

    loss_i, loss_t = pl.pallas_call(
        kernel,
        out_shape=(
            jax.ShapeDtypeStruct((1, 1), jnp.float32),
            jax.ShapeDtypeStruct((1, 1), jnp.float32),
        ),
        grid_spec=pltpu.PrefetchScalarGridSpec(
            num_scalar_prefetch=0,
            grid=(n, n),
            in_specs=[
                pl.BlockSpec(memory_space=pltpu.MemorySpace.SMEM),   # temperature
                pl.BlockSpec((t, d), lambda qi, ki: (qi, 0)),        # image tile
                pl.BlockSpec((t, d), txt_index_map),                 # text tile
            ],
            out_specs=(
                pl.BlockSpec((1, 1), lambda qi, ki: (0, 0)),
                pl.BlockSpec((1, 1), lambda qi, ki: (0, 0)),
            ),
            scratch_shapes=scratch_shapes,
        ),
        # Column stats carry across the row axis, so both axes stay sequential.
        compiler_params=pltpu.CompilerParams(
            dimension_semantics=("arbitrary", "arbitrary"),
            vmem_limit_bytes=int(vmem_limit_bytes)),
        cost_estimate=cost,
    )(temp_arr, img_in, txt_in)
    return loss_i[0, 0], loss_t[0, 0]


def _reference(image_embeds, text_embeds, temperature):
    img = image_embeds / jnp.linalg.norm(image_embeds, axis=-1, keepdims=True)
    txt = text_embeds / jnp.linalg.norm(text_embeds, axis=-1, keepdims=True)
    logits = img @ txt.T / temperature
    labels = jnp.arange(img.shape[0])

    def ce(lg):
        lse = jax.scipy.special.logsumexp(lg, axis=-1)
        return jnp.mean(lse - lg[jnp.arange(lg.shape[0]), labels])

    return ce(logits), ce(logits.T)


if __name__ == "__main__":
    key = jax.random.PRNGKey(0)
    k_img, k_txt = jax.random.split(key)
    batch, dim = 32, 128          # small; block_b=16 -> a 2x2 grid exercises tiling
    image_embeds = jax.random.normal(k_img, (batch, dim), dtype=jnp.float32)
    text_embeds = jax.random.normal(k_txt, (batch, dim), dtype=jnp.float32)
    initial_temperature = 1.0     # learnable nn.Parameter init in the PyTorch module

    ref_i, ref_t = _reference(image_embeds, text_embeds, initial_temperature)

    # Exact path (f32 everywhere), resident normalized txt panel in VMEM.
    loss_i, loss_t = contrastive_loss_with_temperature(
        image_embeds, text_embeds, initial_temperature,
        block_b=16, use_bf16_matmul=False)
    jax.block_until_ready((loss_i, loss_t))
    assert abs(float(loss_i) - float(ref_i)) < 1e-4, (loss_i, ref_i)
    assert abs(float(loss_t) - float(ref_t)) < 1e-4, (loss_t, ref_t)

    # Exact path, streaming text tiles (resident cache disabled via zero budget).
    loss_i_s, loss_t_s = contrastive_loss_with_temperature(
        image_embeds, text_embeds, initial_temperature,
        block_b=16, use_bf16_matmul=False, txt_resident_budget_bytes=0)
    jax.block_until_ready((loss_i_s, loss_t_s))
    assert abs(float(loss_i_s) - float(ref_i)) < 1e-4, (loss_i_s, ref_i)
    assert abs(float(loss_t_s) - float(ref_t)) < 1e-4, (loss_t_s, ref_t)

    # Fast path: bf16 streamed from HBM + bf16 MXU inputs (looser tolerance since
    # the embeddings are rounded to bf16 before normalization/matmul).
    loss_i_bf, loss_t_bf = contrastive_loss_with_temperature(
        image_embeds, text_embeds, initial_temperature,
        block_b=16, use_bf16_matmul=True)
    jax.block_until_ready((loss_i_bf, loss_t_bf))
    assert abs(float(loss_i_bf) - float(ref_i)) < 2e-2, (loss_i_bf, ref_i)
    assert abs(float(loss_t_bf) - float(ref_t)) < 2e-2, (loss_t_bf, ref_t)

    # Single-block (n == 1) grid path.
    loss_i_1, loss_t_1 = contrastive_loss_with_temperature(
        image_embeds, text_embeds, initial_temperature,
        block_b=batch, use_bf16_matmul=False)
    jax.block_until_ready((loss_i_1, loss_t_1))
    assert abs(float(loss_i_1) - float(ref_i)) < 1e-4, (loss_i_1, ref_i)
    assert abs(float(loss_t_1) - float(ref_t)) < 1e-4, (loss_t_1, ref_t)

    print("KERNEL_OK")
</pallas_src>

<mosaic_0001>
module attributes {stable_mosaic.version = 11 : i64} {
  func.func @_contrastive_kernel(%arg0: i32, %arg1: i32, %arg2: memref<1xf32, #tpu.memory_space<smem>>, %arg3: memref<16x128xf32, #tpu.memory_space<vmem>>, %arg4: memref<16x128xf32, #tpu.memory_space<vmem>>, %arg5: memref<1x1xf32, #tpu.memory_space<vmem>>, %arg6: memref<1x1xf32, #tpu.memory_space<vmem>>, %arg7: memref<16x128xf32, #tpu.memory_space<vmem>>, %arg8: memref<2x16x128xf32, #tpu.memory_space<vmem>>, %arg9: memref<16x1xf32, #tpu.memory_space<vmem>>, %arg10: memref<16x1xf32, #tpu.memory_space<vmem>>, %arg11: memref<2x1x16xf32, #tpu.memory_space<vmem>>, %arg12: memref<2x1x16xf32, #tpu.memory_space<vmem>>, %arg13: memref<1x1xf32, #tpu.memory_space<vmem>>, %arg14: memref<1x1xf32, #tpu.memory_space<vmem>>, %arg15: memref<1x1xf32, #tpu.memory_space<vmem>>) attributes {dimension_semantics = [#tpu.dimension_semantics<arbitrary>, #tpu.dimension_semantics<arbitrary>], iteration_bounds = array<i64: 2, 2>, scalar_prefetch = 0 : i64, scratch_operands = 9 : i64, tpu.core_type = #tpu.core_type<tc>, window_params = [{transform_indices = @transform_0, window_bounds = array<i64: 1>}, {transform_indices = @transform_1, window_bounds = array<i64: 16, 128>}, {transform_indices = @transform_2, window_bounds = array<i64: 16, 128>}, {pipeline_mode = #tpu.pipeline_mode<synchronous>, transform_indices = @transform_3, window_bounds = array<i64: 1, 1>}, {pipeline_mode = #tpu.pipeline_mode<synchronous>, transform_indices = @transform_4, window_bounds = array<i64: 1, 1>}]} {
    %c0 = arith.constant 0 : index
    %0 = memref.load %arg2[%c0] : memref<1xf32, #tpu.memory_space<smem>>
    %cst = arith.constant 1.000000e+00 : f32
    %1 = arith.divf %cst, %0 : f32
    %c0_i32 = arith.constant 0 : i32
    %2 = arith.cmpi eq, %arg0, %c0_i32 : i32
    %c0_i32_0 = arith.constant 0 : i32
    %3 = arith.cmpi eq, %arg1, %c0_i32_0 : i32
    %4 = arith.andi %2, %3 : i1
    %5 = arith.extui %4 : i1 to i32
    %c0_i32_1 = arith.constant 0 : i32
    %6 = arith.cmpi ne, %5, %c0_i32_1 : i32
    scf.if %6 {
      %cst_40 = arith.constant 0.000000e+00 : f32
      %86 = vector.broadcast %cst_40 : f32 to vector<1x1xf32>
      %c0_41 = arith.constant 0 : index
      %c0_42 = arith.constant 0 : index
      %87 = vector.load %arg13[%c0_41, %c0_42] : memref<1x1xf32, #tpu.memory_space<vmem>>, vector<1x1xf32>
      tpu.vector_store %arg13[%c0_41, %c0_42], %86 {strides = array<i32>} : memref<1x1xf32, #tpu.memory_space<vmem>>, vector<1x1xf32>,
      %c0_43 = arith.constant 0 : index
      %c0_44 = arith.constant 0 : index
      %88 = vector.load %arg14[%c0_43, %c0_44] : memref<1x1xf32, #tpu.memory_space<vmem>>, vector<1x1xf32>
      tpu.vector_store %arg14[%c0_43, %c0_44], %86 {strides = array<i32>} : memref<1x1xf32, #tpu.memory_space<vmem>>, vector<1x1xf32>,
      %c0_45 = arith.constant 0 : index
      %c0_46 = arith.constant 0 : index
      %89 = vector.load %arg15[%c0_45, %c0_46] : memref<1x1xf32, #tpu.memory_space<vmem>>, vector<1x1xf32>
      tpu.vector_store %arg15[%c0_45, %c0_46], %86 {strides = array<i32>} : memref<1x1xf32, #tpu.memory_space<vmem>>, vector<1x1xf32>,
    } else {
    }
    %c0_i32_2 = arith.constant 0 : i32
    %7 = arith.cmpi eq, %arg1, %c0_i32_2 : i32
    %8 = arith.extui %7 : i1 to i32
    %c0_i32_3 = arith.constant 0 : i32
    %9 = arith.cmpi ne, %8, %c0_i32_3 : i32
    scf.if %9 {
      %cst_40 = arith.constant 0xFF800000 : f32
      %86 = vector.broadcast %cst_40 : f32 to vector<16x1xf32>
      %c0_41 = arith.constant 0 : index
      %c0_42 = arith.constant 0 : index
      %87 = vector.load %arg9[%c0_41, %c0_42] : memref<16x1xf32, #tpu.memory_space<vmem>>, vector<16x1xf32>
      tpu.vector_store %arg9[%c0_41, %c0_42], %86 {strides = array<i32>} : memref<16x1xf32, #tpu.memory_space<vmem>>, vector<16x1xf32>,
      %cst_43 = arith.constant 0.000000e+00 : f32
      %88 = vector.broadcast %cst_43 : f32 to vector<16x1xf32>
      %c0_44 = arith.constant 0 : index
      %c0_45 = arith.constant 0 : index
      %89 = vector.load %arg10[%c0_44, %c0_45] : memref<16x1xf32, #tpu.memory_space<vmem>>, vector<16x1xf32>
      tpu.vector_store %arg10[%c0_44, %c0_45], %88 {strides = array<i32>} : memref<16x1xf32, #tpu.memory_space<vmem>>, vector<16x1xf32>,
      %c0_46 = arith.constant 0 : index
      %c0_47 = arith.constant 0 : index
      %90 = vector.load %arg3[%c0_46, %c0_47] : memref<16x128xf32, #tpu.memory_space<vmem>>, vector<16x128xf32>
      %91 = arith.mulf %90, %90 : vector<16x128xf32>
      %cst_48 = arith.constant dense<0.000000e+00> : vector<16xf32>
      %92 = vector.multi_reduction <add>, %91, %cst_48 [1] : vector<16x128xf32> to vector<16xf32>
      %93 = vector.shape_cast %92 : vector<16xf32> to vector<16x1xf32>
      %94 = math.rsqrt %93 : vector<16x1xf32>
      %95 = vector.broadcast %1 : f32 to vector<16x1xf32>
      %96 = arith.mulf %94, %95 : vector<16x1xf32>
      %97 = vector.broadcast %96 : vector<16x1xf32> to vector<16x128xf32>
      %98 = arith.mulf %90, %97 : vector<16x128xf32>
      %c0_49 = arith.constant 0 : index
      %c0_50 = arith.constant 0 : index
      %99 = vector.load %arg7[%c0_49, %c0_50] : memref<16x128xf32, #tpu.memory_space<vmem>>, vector<16x128xf32>
      tpu.vector_store %arg7[%c0_49, %c0_50], %98 {strides = array<i32>} : memref<16x128xf32, #tpu.memory_space<vmem>>, vector<16x128xf32>,
    } else {
    }
    %c0_i32_4 = arith.constant 0 : i32
    %10 = arith.cmpi eq, %arg0, %c0_i32_4 : i32
    %11 = arith.extui %10 : i1 to i32
    %c0_i32_5 = arith.constant 0 : i32
    %12 = arith.cmpi ne, %11, %c0_i32_5 : i32
    scf.if %12 {
      %cst_40 = arith.constant 0xFF800000 : f32
      %86 = vector.broadcast %cst_40 : f32 to vector<1x16xf32>
      %87 = arith.index_cast %arg1 : i32 to index
      %c0_41 = arith.constant 0 : index
      %c0_42 = arith.constant 0 : index
      %88 = vector.load %arg11[%87, %c0_41, %c0_42] : memref<2x1x16xf32, #tpu.memory_space<vmem>>, vector<1x1x16xf32>
      %89 = vector.shape_cast %88 : vector<1x1x16xf32> to vector<1x16xf32>
      %90 = vector.shape_cast %86 : vector<1x16xf32> to vector<1x1x16xf32>
      tpu.vector_store %arg11[%87, %c0_41, %c0_42], %90 {strides = array<i32>} : memref<2x1x16xf32, #tpu.memory_space<vmem>>, vector<1x1x16xf32>,
      %cst_43 = arith.constant 0.000000e+00 : f32
      %91 = vector.broadcast %cst_43 : f32 to vector<1x16xf32>
      %92 = arith.index_cast %arg1 : i32 to index
      %c0_44 = arith.constant 0 : index
      %c0_45 = arith.constant 0 : index
      %93 = vector.load %arg12[%92, %c0_44, %c0_45] : memref<2x1x16xf32, #tpu.memory_space<vmem>>, vector<1x1x16xf32>
      %94 = vector.shape_cast %93 : vector<1x1x16xf32> to vector<1x16xf32>
      %95 = vector.shape_cast %91 : vector<1x16xf32> to vector<1x1x16xf32>
      tpu.vector_store %arg12[%92, %c0_44, %c0_45], %95 {strides = array<i32>} : memref<2x1x16xf32, #tpu.memory_space<vmem>>, vector<1x1x16xf32>,
    } else {
    }
    %c0_i32_6 = arith.constant 0 : i32
    %13 = arith.cmpi eq, %arg0, %c0_i32_6 : i32
    %14 = arith.extui %13 : i1 to i32
    %c0_i32_7 = arith.constant 0 : i32
    %15 = arith.cmpi ne, %14, %c0_i32_7 : i32
    scf.if %15 {
      %c0_40 = arith.constant 0 : index
      %c0_41 = arith.constant 0 : index
      %86 = vector.load %arg4[%c0_40, %c0_41] : memref<16x128xf32, #tpu.memory_space<vmem>>, vector<16x128xf32>
      %87 = arith.mulf %86, %86 : vector<16x128xf32>
      %cst_42 = arith.constant dense<0.000000e+00> : vector<16xf32>
      %88 = vector.multi_reduction <add>, %87, %cst_42 [1] : vector<16x128xf32> to vector<16xf32>
      %89 = vector.shape_cast %88 : vector<16xf32> to vector<16x1xf32>
      %90 = math.rsqrt %89 : vector<16x1xf32>
      %91 = vector.broadcast %90 : vector<16x1xf32> to vector<16x128xf32>
      %92 = arith.mulf %86, %91 : vector<16x128xf32>
      %93 = arith.index_cast %arg1 : i32 to index
      %c0_43 = arith.constant 0 : index
      %c0_44 = arith.constant 0 : index
      %94 = vector.load %arg8[%93, %c0_43, %c0_44] : memref<2x16x128xf32, #tpu.memory_space<vmem>>, vector<1x16x128xf32>
      %95 = vector.shape_cast %94 : vector<1x16x128xf32> to vector<16x128xf32>
      %96 = vector.shape_cast %92 : vector<16x128xf32> to vector<1x16x128xf32>
      tpu.vector_store %arg8[%93, %c0_43, %c0_44], %96 {strides = array<i32>} : memref<2x16x128xf32, #tpu.memory_space<vmem>>, vector<1x16x128xf32>,
    } else {
    }
    %16 = arith.index_cast %arg1 : i32 to index
    %c0_8 = arith.constant 0 : index
    %c0_9 = arith.constant 0 : index
    %17 = vector.load %arg8[%16, %c0_8, %c0_9] : memref<2x16x128xf32, #tpu.memory_space<vmem>>, vector<1x16x128xf32>
    %18 = vector.shape_cast %17 : vector<1x16x128xf32> to vector<16x128xf32>
    %c0_10 = arith.constant 0 : index
    %c0_11 = arith.constant 0 : index
    %19 = vector.load %arg7[%c0_10, %c0_11] : memref<16x128xf32, #tpu.memory_space<vmem>>, vector<16x128xf32>
    %cst_12 = arith.constant dense<0.000000e+00> : vector<16x16xf32>
    %20 = tpu.matmul %19, %18, %cst_12 {dimension_numbers = #tpu.dot_dimension_numbers<[1], [1], [0], [0], [0, 0, 1, 0], [], []>} : vector<16x128xf32>, vector<16x128xf32>, vector<16x16xf32> -> vector<16x16xf32>
    %21 = arith.cmpi eq, %arg0, %arg1 : i32
    %22 = arith.extui %21 : i1 to i32
    %c0_i32_13 = arith.constant 0 : i32
    %23 = arith.cmpi ne, %22, %c0_i32_13 : i32
    scf.if %23 {
      %c0_40 = arith.constant 0 : index
      %c0_41 = arith.constant 0 : index
      %86 = vector.load %arg15[%c0_40, %c0_41] : memref<1x1xf32, #tpu.memory_space<vmem>>, vector<1x1xf32>
      %87 = arith.mulf %19, %18 : vector<16x128xf32>
      %88 = vector.shape_cast %87 : vector<16x128xf32> to vector<1x16x128xf32>
      %cst_42 = arith.constant dense<0.000000e+00> : vector<1xf32>
      %89 = vector.multi_reduction <add>, %88, %cst_42 [1, 2] : vector<1x16x128xf32> to vector<1xf32>
      %90 = vector.shape_cast %89 : vector<1xf32> to vector<1x1x1xf32>
      %91 = vector.extract %90[0, 0, 0] : f32 from vector<1x1x1xf32>
      %92 = vector.broadcast %91 : f32 to vector<1x1xf32>
      %93 = arith.addf %86, %92 : vector<1x1xf32>
      %c0_43 = arith.constant 0 : index
      %c0_44 = arith.constant 0 : index
      %94 = vector.load %arg15[%c0_43, %c0_44] : memref<1x1xf32, #tpu.memory_space<vmem>>, vector<1x1xf32>
      tpu.vector_store %arg15[%c0_43, %c0_44], %93 {strides = array<i32>} : memref<1x1xf32, #tpu.memory_space<vmem>>, vector<1x1xf32>,
    } else {
    }
    %c0_14 = arith.constant 0 : index
    %c0_15 = arith.constant 0 : index
    %24 = vector.load %arg9[%c0_14, %c0_15] : memref<16x1xf32, #tpu.memory_space<vmem>>, vector<16x1xf32>
    %cst_16 = arith.constant dense<0xFF800000> : vector<16xf32>
    %25 = vector.multi_reduction <maximumf>, %20, %cst_16 [1] : vector<16x16xf32> to vector<16xf32>
    %26 = vector.shape_cast %25 : vector<16xf32> to vector<16x1xf32>
    %27 = arith.maximumf %24, %26 : vector<16x1xf32>
    %28 = arith.subf %24, %27 : vector<16x1xf32>
    %29 = math.exp %28 : vector<16x1xf32>
    %30 = vector.broadcast %27 : vector<16x1xf32> to vector<16x16xf32>
    %31 = arith.subf %20, %30 : vector<16x16xf32>
    %32 = math.exp %31 : vector<16x16xf32>
    %c0_17 = arith.constant 0 : index
    %c0_18 = arith.constant 0 : index
    %33 = vector.load %arg10[%c0_17, %c0_18] : memref<16x1xf32, #tpu.memory_space<vmem>>, vector<16x1xf32>
    %34 = arith.mulf %29, %33 : vector<16x1xf32>
    %cst_19 = arith.constant dense<0.000000e+00> : vector<16xf32>
    %35 = vector.multi_reduction <add>, %32, %cst_19 [1] : vector<16x16xf32> to vector<16xf32>
    %36 = vector.shape_cast %35 : vector<16xf32> to vector<16x1xf32>
    %37 = arith.addf %34, %36 : vector<16x1xf32>
    %c0_20 = arith.constant 0 : index
    %c0_21 = arith.constant 0 : index
    %38 = vector.load %arg9[%c0_20, %c0_21] : memref<16x1xf32, #tpu.memory_space<vmem>>, vector<16x1xf32>
    tpu.vector_store %arg9[%c0_20, %c0_21], %27 {strides = array<i32>} : memref<16x1xf32, #tpu.memory_space<vmem>>, vector<16x1xf32>,
    %c0_22 = arith.constant 0 : index
    %c0_23 = arith.constant 0 : index
    %39 = vector.load %arg10[%c0_22, %c0_23] : memref<16x1xf32, #tpu.memory_space<vmem>>, vector<16x1xf32>
    tpu.vector_store %arg10[%c0_22, %c0_23], %37 {strides = array<i32>} : memref<16x1xf32, #tpu.memory_space<vmem>>, vector<16x1xf32>,
    %40 = vector.shape_cast %27 : vector<16x1xf32> to vector<1x16x1xf32>
    %cst_24 = arith.constant dense<0xFF800000> : vector<1xf32>
    %41 = vector.multi_reduction <maximumf>, %40, %cst_24 [1, 2] : vector<1x16x1xf32> to vector<1xf32>
    %42 = vector.shape_cast %41 : vector<1xf32> to vector<1x1x1xf32>
    %43 = vector.extract %42[0, 0, 0] : f32 from vector<1x1x1xf32>
    %44 = vector.broadcast %43 : f32 to vector<16x1xf32>
    %45 = arith.subf %27, %44 : vector<16x1xf32>
    %46 = math.exp %45 : vector<16x1xf32>
    %47 = vector.broadcast %46 : vector<16x1xf32> to vector<16x16xf32>
    %48 = arith.mulf %32, %47 : vector<16x16xf32>
    %cst_25 = arith.constant dense<0.000000e+00> : vector<16xf32>
    %49 = vector.multi_reduction <add>, %48, %cst_25 [0] : vector<16x16xf32> to vector<16xf32>
    %50 = vector.shape_cast %49 : vector<16xf32> to vector<1x16xf32>
    %51 = arith.index_cast %arg1 : i32 to index
    %c0_26 = arith.constant 0 : index
    %c0_27 = arith.constant 0 : index
    %52 = vector.load %arg11[%51, %c0_26, %c0_27] : memref<2x1x16xf32, #tpu.memory_space<vmem>>, vector<1x1x16xf32>
    %53 = vector.shape_cast %52 : vector<1x1x16xf32> to vector<1x16xf32>
    %54 = arith.index_cast %arg1 : i32 to index
    %c0_28 = arith.constant 0 : index
    %c0_29 = arith.constant 0 : index
    %55 = vector.load %arg12[%54, %c0_28, %c0_29] : memref<2x1x16xf32, #tpu.memory_space<vmem>>, vector<1x1x16xf32>
    %56 = vector.shape_cast %55 : vector<1x1x16xf32> to vector<1x16xf32>
    %57 = vector.broadcast %43 : f32 to vector<1x16xf32>
    %58 = arith.maximumf %53, %57 : vector<1x16xf32>
    %59 = arith.subf %53, %58 : vector<1x16xf32>
    %60 = math.exp %59 : vector<1x16xf32>
    %61 = arith.mulf %56, %60 : vector<1x16xf32>
    %62 = vector.broadcast %43 : f32 to vector<1x16xf32>
    %63 = arith.subf %62, %58 : vector<1x16xf32>
    %64 = math.exp %63 : vector<1x16xf32>
    %65 = arith.mulf %50, %64 : vector<1x16xf32>
    %66 = arith.addf %61, %65 : vector<1x16xf32>
    %67 = arith.index_cast %arg1 : i32 to index
    %c0_30 = arith.constant 0 : index
    %c0_31 = arith.constant 0 : index
    %68 = vector.load %arg11[%67, %c0_30, %c0_31] : memref<2x1x16xf32, #tpu.memory_space<vmem>>, vector<1x1x16xf32>
    %69 = vector.shape_cast %68 : vector<1x1x16xf32> to vector<1x16xf32>
    %70 = vector.shape_cast %58 : vector<1x16xf32> to vector<1x1x16xf32>
    tpu.vector_store %arg11[%67, %c0_30, %c0_31], %70 {strides = array<i32>} : memref<2x1x16xf32, #tpu.memory_space<vmem>>, vector<1x1x16xf32>,
    %71 = arith.index_cast %arg1 : i32 to index
    %c0_32 = arith.constant 0 : index
    %c0_33 = arith.constant 0 : index
    %72 = vector.load %arg12[%71, %c0_32, %c0_33] : memref<2x1x16xf32, #tpu.memory_space<vmem>>, vector<1x1x16xf32>
    %73 = vector.shape_cast %72 : vector<1x1x16xf32> to vector<1x16xf32>
    %74 = vector.shape_cast %66 : vector<1x16xf32> to vector<1x1x16xf32>
    tpu.vector_store %arg12[%71, %c0_32, %c0_33], %74 {strides = array<i32>} : memref<2x1x16xf32, #tpu.memory_space<vmem>>, vector<1x1x16xf32>,
    %c1_i32 = arith.constant 1 : i32
    %75 = arith.cmpi eq, %arg1, %c1_i32 : i32
    %76 = arith.extui %75 : i1 to i32
    %c0_i32_34 = arith.constant 0 : i32
    %77 = arith.cmpi ne, %76, %c0_i32_34 : i32
    scf.if %77 {
      %c0_40 = arith.constant 0 : index
      %c0_41 = arith.constant 0 : index
      %86 = vector.load %arg13[%c0_40, %c0_41] : memref<1x1xf32, #tpu.memory_space<vmem>>, vector<1x1xf32>
      %87 = math.log %37 : vector<16x1xf32>
      %88 = arith.addf %27, %87 : vector<16x1xf32>
      %89 = vector.shape_cast %88 : vector<16x1xf32> to vector<1x16x1xf32>
      %cst_42 = arith.constant dense<0.000000e+00> : vector<1xf32>
      %90 = vector.multi_reduction <add>, %89, %cst_42 [1, 2] : vector<1x16x1xf32> to vector<1xf32>
      %91 = vector.shape_cast %90 : vector<1xf32> to vector<1x1x1xf32>
      %92 = vector.extract %91[0, 0, 0] : f32 from vector<1x1x1xf32>
      %93 = vector.broadcast %92 : f32 to vector<1x1xf32>
      %94 = arith.addf %86, %93 : vector<1x1xf32>
      %c0_43 = arith.constant 0 : index
      %c0_44 = arith.constant 0 : index
      %95 = vector.load %arg13[%c0_43, %c0_44] : memref<1x1xf32, #tpu.memory_space<vmem>>, vector<1x1xf32>
      tpu.vector_store %arg13[%c0_43, %c0_44], %94 {strides = array<i32>} : memref<1x1xf32, #tpu.memory_space<vmem>>, vector<1x1xf32>,
    } else {
    }
    %c1_i32_35 = arith.constant 1 : i32
    %78 = arith.cmpi eq, %arg0, %c1_i32_35 : i32
    %79 = arith.extui %78 : i1 to i32
    %c0_i32_36 = arith.constant 0 : i32
    %80 = arith.cmpi ne, %79, %c0_i32_36 : i32
    scf.if %80 {
      %c0_40 = arith.constant 0 : index
      %c0_41 = arith.constant 0 : index
      %86 = vector.load %arg14[%c0_40, %c0_41] : memref<1x1xf32, #tpu.memory_space<vmem>>, vector<1x1xf32>
      %87 = math.log %66 : vector<1x16xf32>
      %88 = arith.addf %58, %87 : vector<1x16xf32>
      %89 = vector.shape_cast %88 : vector<1x16xf32> to vector<1x1x16xf32>
      %cst_42 = arith.constant dense<0.000000e+00> : vector<1xf32>
      %90 = vector.multi_reduction <add>, %89, %cst_42 [1, 2] : vector<1x1x16xf32> to vector<1xf32>
      %91 = vector.shape_cast %90 : vector<1xf32> to vector<1x1x1xf32>
      %92 = vector.extract %91[0, 0, 0] : f32 from vector<1x1x1xf32>
      %93 = vector.broadcast %92 : f32 to vector<1x1xf32>
      %94 = arith.addf %86, %93 : vector<1x1xf32>
      %c0_43 = arith.constant 0 : index
      %c0_44 = arith.constant 0 : index
      %95 = vector.load %arg14[%c0_43, %c0_44] : memref<1x1xf32, #tpu.memory_space<vmem>>, vector<1x1xf32>
      tpu.vector_store %arg14[%c0_43, %c0_44], %94 {strides = array<i32>} : memref<1x1xf32, #tpu.memory_space<vmem>>, vector<1x1xf32>,
    } else {
    }
    %c1_i32_37 = arith.constant 1 : i32
    %81 = arith.cmpi eq, %arg0, %c1_i32_37 : i32
    %c1_i32_38 = arith.constant 1 : i32
    %82 = arith.cmpi eq, %arg1, %c1_i32_38 : i32
    %83 = arith.andi %81, %82 : i1
    %84 = arith.extui %83 : i1 to i32
    %c0_i32_39 = arith.constant 0 : i32
    %85 = arith.cmpi ne, %84, %c0_i32_39 : i32
    scf.if %85 {
      %c0_40 = arith.constant 0 : index
      %c0_41 = arith.constant 0 : index
      %86 = vector.load %arg13[%c0_40, %c0_41] : memref<1x1xf32, #tpu.memory_space<vmem>>, vector<1x1xf32>
      %c0_42 = arith.constant 0 : index
      %c0_43 = arith.constant 0 : index
      %87 = vector.load %arg15[%c0_42, %c0_43] : memref<1x1xf32, #tpu.memory_space<vmem>>, vector<1x1xf32>
      %88 = arith.subf %86, %87 : vector<1x1xf32>
      %cst_44 = arith.constant 3.125000e-02 : f32
      %89 = vector.broadcast %cst_44 : f32 to vector<1x1xf32>
      %90 = arith.mulf %88, %89 : vector<1x1xf32>
      %c0_45 = arith.constant 0 : index
      %c0_46 = arith.constant 0 : index
      %91 = vector.load %arg5[%c0_45, %c0_46] : memref<1x1xf32, #tpu.memory_space<vmem>>, vector<1x1xf32>
      tpu.vector_store %arg5[%c0_45, %c0_46], %90 {strides = array<i32>} : memref<1x1xf32, #tpu.memory_space<vmem>>, vector<1x1xf32>,
      %c0_47 = arith.constant 0 : index
      %c0_48 = arith.constant 0 : index
      %92 = vector.load %arg14[%c0_47, %c0_48] : memref<1x1xf32, #tpu.memory_space<vmem>>, vector<1x1xf32>
      %c0_49 = arith.constant 0 : index
      %c0_50 = arith.constant 0 : index
      %93 = vector.load %arg15[%c0_49, %c0_50] : memref<1x1xf32, #tpu.memory_space<vmem>>, vector<1x1xf32>
      %94 = arith.subf %92, %93 : vector<1x1xf32>
      %cst_51 = arith.constant 3.125000e-02 : f32
      %95 = vector.broadcast %cst_51 : f32 to vector<1x1xf32>
      %96 = arith.mulf %94, %95 : vector<1x1xf32>
      %c0_52 = arith.constant 0 : index
      %c0_53 = arith.constant 0 : index
      %97 = vector.load %arg6[%c0_52, %c0_53] : memref<1x1xf32, #tpu.memory_space<vmem>>, vector<1x1xf32>
      tpu.vector_store %arg6[%c0_52, %c0_53], %96 {strides = array<i32>} : memref<1x1xf32, #tpu.memory_space<vmem>>, vector<1x1xf32>,
    } else {
    }
    return
  }
  func.func @transform_0(%arg0: i32, %arg1: i32) -> i32 {
    %c0_i32 = arith.constant 0 : i32
    %c0_i32_0 = arith.constant 0 : i32
    return %c0_i32 : i32
  }
  func.func @transform_1(%arg0: i32, %arg1: i32) -> (i32, i32) {
    %c0_i32 = arith.constant 0 : i32
    %c0_i32_0 = arith.constant 0 : i32
    return %arg0, %c0_i32 : i32, i32
  }
  func.func @transform_2(%arg0: i32, %arg1: i32) -> (i32, i32) {
    %c0_i32 = arith.constant 0 : i32
    %0 = arith.cmpi eq, %arg0, %c0_i32 : i32
    %c0_i32_0 = arith.constant 0 : i32
    %1 = arith.select %0, %arg1, %c0_i32_0 : i32
    %c0_i32_1 = arith.constant 0 : i32
    %c0_i32_2 = arith.constant 0 : i32
    return %1, %c0_i32_1 : i32, i32
  }
  func.func @transform_3(%arg0: i32, %arg1: i32) -> (i32, i32) {
    %c0_i32 = arith.constant 0 : i32
    %c0_i32_0 = arith.constant 0 : i32
    %c0_i32_1 = arith.constant 0 : i32
    return %c0_i32, %c0_i32_0 : i32, i32
  }
  func.func @transform_4(%arg0: i32, %arg1: i32) -> (i32, i32) {
    %c0_i32 = arith.constant 0 : i32
    %c0_i32_0 = arith.constant 0 : i32
    %c0_i32_1 = arith.constant 0 : i32
    return %c0_i32, %c0_i32_0 : i32, i32
  }
}

</mosaic_0001>

<llo_original>
// kernel: tpu_custom_call.1
$region0: #{tpu_custom_call.1}
  #allocation0 [shape = 'u32[]', space=smem, size = 0x4, offset = 0x4, fixed_abs, tag = 'smem constant byte address 0x4 - core index']
  #allocation1 [shape = 'u32[144,128]{1,0:T(1,128)}', space=vmem, size = 0x12000, scoped, tag = 'internal scratch']
  #allocation2 [shape = 'f32[16,128]{1,0:T(8,128)}', space=vmem, size = 0x2000, scoped, tag = 'scratch operand']
  #allocation3 [shape = 'f32[2,16,128]{2,1,0:T(8,128)}', space=vmem, size = 0x4000, scoped, tag = 'scratch operand']
  #allocation4 [shape = 'f32[16,1]{1,0:T(8,128)}', space=vmem, size = 0x2000, scoped, tag = 'scratch operand']
  #allocation5 [shape = 'f32[16,1]{1,0:T(8,128)}', space=vmem, size = 0x2000, scoped, tag = 'scratch operand']
  #allocation6 [shape = 'f32[2,1,16]{2,1,0:T(1,128)}', space=vmem, size = 0x400, scoped, tag = 'scratch operand']
  #allocation7 [shape = 'f32[2,1,16]{2,1,0:T(1,128)}', space=vmem, size = 0x400, scoped, tag = 'scratch operand']
  #allocation8 [shape = 'f32[1,1]{1,0:T(1,128)}', space=vmem, size = 0x200, scoped, tag = 'scratch operand']
  #allocation9 [shape = 'f32[1,1]{1,0:T(1,128)}', space=vmem, size = 0x200, scoped, tag = 'scratch operand']
  #allocation10 [shape = 'f32[1,1]{1,0:T(1,128)}', space=vmem, size = 0x200, scoped, tag = 'scratch operand']
  #allocation11 [shape = 'f32[1]{0:T(128)S(6)}', space=smem, size = 0x200, scoped, tag = 'scoped memory for tpu_custom_call.1']
  %s0 = inlined_call_operand.<no memory space> [shape: f32[1], index: 0, kind: input, shape index: {}]
  %s1 = inlined_call_operand.hbm [shape: f32[32,128], index: 1, kind: input, shape index: {}]
  %s2 = inlined_call_operand.hbm [shape: f32[32,128], index: 2, kind: input, shape index: {}]
  %s3 = inlined_call_operand.hbm [shape: f32[1,1], index: 3, kind: output, shape index: {0}]
  %s4 = inlined_call_operand.hbm [shape: f32[1,1], index: 4, kind: output, shape index: {1}]
  %5 = xla_tuple %s3, %s4
  %s6 = sld [smem:[#allocation0]]
  $region89: #{tpu_custom_call.1} parent=0
    _
  %s8 = ssub.s32 1, %s6
  %s9 = scalar_select 0, %s8, %s6
  %10 = sst [smem:[#allocation11]] %s0
  $region1: #{tpu_custom_call.1} parent=0
    #allocation12 [shape = 'u8[16384]{0}', space=vmem, size = 0x4000, scoped, tag = 'input window, operand 1']
    #allocation13 [shape = 's32[2]{0}', space=sflag, size = 0x8, scoped, tag = 'scoped memory for tpu_custom_call.1']
    #allocation14 [shape = 's32[2]{0}', space=sflag, size = 0x8, scoped, tag = 'scoped memory for tpu_custom_call.1']
    #allocation15 [shape = 'u8[16384]{0}', space=vmem, size = 0x4000, scoped, tag = 'input window, operand 2']
    #allocation16 [shape = 's32[2]{0}', space=sflag, size = 0x8, scoped, tag = 'scoped memory for tpu_custom_call.1']
    #allocation17 [shape = 'u8[512]{0}', space=vmem, size = 0x400, scoped, tag = 'output window, operand 0, single buffered']
    #allocation18 [shape = 'u8[512]{0}', space=vmem, size = 0x400, scoped, tag = 'output window, operand 1, single buffered']
    #allocation19 [shape = 's32[1]{0}', space=sflag, size = 0x4, scoped, tag = 'scoped memory for tpu_custom_call.1']
    %11 = vsyncpa [#allocation13], 0
    %s12 = scalar_lea.sflag [#allocation13], 1
    %13 = vsyncpa %s12, 0
    %14 = vsyncpa [#allocation16], 0
    %s15 = scalar_lea.sflag [#allocation16], 1
    %16 = vsyncpa %s15, 0
    %17 = vsyncpa [#allocation14], 0
    %18 = vsyncpa [#allocation19], 0
    loop: start=0, step=1, limit=6
    $region2: #{tpu_custom_call.1} parent=1 // loop_pre_header
      _
    $region3: #{tpu_custom_call.1} parent=1 // loop_header
      %s20 = sphi 0, %s24
      %p21 = scmp.ge.s32.totalorder %s20, 6
      %s27 = sphi 0, %s39
      %s28 = sphi 0, %s35
      %s29 = sphi 0, %s27
      %s30 = sphi 0, %s28
      %s31 = sphi 0, %s29
      %s32 = sphi 0, %s30
      %s40 = sphi 0, %s40
      %s42 = sphi 0, %s40
      %s43 = sphi 0, %s42
      %s57 = sphi 0, %s43
      %s63 = sphi 0, %s65
      %s66 = sphi 0, %s63
      %s67 = sphi 0, %s66
      %s83 = sphi 0, %s67
      %s93 = sphi 0, %s95
      %s96 = sphi 0, %s93
      %s97 = sphi 0, %s96
      %s113 = sphi 0, %s97
      %s117 = sphi 0, %s117
      %s119 = sphi 0, %s117
      %s120 = sphi 0, %s119
      %s134 = sphi 0, %s120
      %s138 = sphi 0, %s138
      %s140 = sphi 0, %s138
      %s141 = sphi 0, %s140
      %s155 = sphi 0, %s141
    $region4: #{tpu_custom_call.1} parent=1 // loop_header_branch
      %23 = sbr.rel (%p21) target = $region8
    $region5: #{tpu_custom_call.1} parent=1 // loop_body
      %s25 = ssub.s32 %s20, 1
      %s26 = ssub.s32 %s20, 2
      %s33 = sadd.s32 1, %s28
      %p34 = scmp.ge.s32.totalorder %s33, 2
      %s35 = scalar_select %p34, 0, %s33
      %s36 = sadd.s32 1, %s27
      %s37 = scalar_select %p34, %s36, %s27
      %p38 = scmp.ge.s32.totalorder %s37, 2
      %s39 = scalar_select %p38, 0, %s37
      %s41 = sadd.s32 %s40, 1
      %p44 = scmp.eq.s32.totalorder %s20, 3
      %p45 = scmp.ne.s32.totalorder %s40, %s42
      %p46 = scmp.eq.s32.totalorder %s20, 0
      %p47 = por %p45, %p46
      %p48 = scmp.ne.s32.totalorder %s40, %s42
      %p49 = scmp.eq.s32.totalorder %s25, 3
      %p50 = por %p48, %p49
      %p51 = scmp.ne.s32.totalorder %s42, %s43
      %p52 = scmp.eq.s32.totalorder %s25, 0
      %p53 = por %p51, %p52
      %p54 = scmp.ne.s32.totalorder %s42, %s43
      %p55 = scmp.eq.s32.totalorder %s26, 3
      %p56 = por %p54, %p55
      %p58 = scmp.ne.s32.totalorder %s43, %s57
      %p59 = scmp.eq.s32.totalorder %s26, 0
      %p60 = por %p58, %p59
      %s61 = ssub.s32 %s27, %s39
      %p62 = scmp.eq.s32.totalorder %s61, 0
      %s64 = sadd.s32 %s63, 1
      %s65 = scalar_select %p62, %s63, %s64
      %p68 = pneg %p62
      %p69 = scmp.eq.s32.totalorder %s20, 3
      %p70 = por %p68, %p69
      %p71 = scmp.ne.s32.totalorder %s63, %s66
      %p72 = scmp.eq.s32.totalorder %s20, 0
      %p73 = por %p71, %p72
      %p74 = scmp.ne.s32.totalorder %s63, %s66
      %p75 = scmp.eq.s32.totalorder %s25, 3
      %p76 = por %p74, %p75
      %p77 = scmp.ne.s32.totalorder %s66, %s67
      %p78 = scmp.eq.s32.totalorder %s25, 0
      %p79 = por %p77, %p78
      %p80 = scmp.ne.s32.totalorder %s66, %s67
      %p81 = scmp.eq.s32.totalorder %s26, 3
      %p82 = por %p80, %p81
      %p84 = scmp.ne.s32.totalorder %s67, %s83
      %p85 = scmp.eq.s32.totalorder %s26, 0
      %p86 = por %p84, %p85
      %p87 = scmp.eq.s32.totalorder %s27, 0
      %s88 = scalar_select %p87, %s28, 0
      %p89 = scmp.eq.s32.totalorder %s39, 0
      %s90 = scalar_select %p89, %s35, 0
      %s91 = ssub.s32 %s88, %s90
      %p92 = scmp.eq.s32.totalorder %s91, 0
      %s94 = sadd.s32 %s93, 1
      %s95 = scalar_select %p92, %s93, %s94
      %p98 = pneg %p92
      %p99 = scmp.eq.s32.totalorder %s20, 3
      %p100 = por %p98, %p99
      %p101 = scmp.ne.s32.totalorder %s93, %s96
      %p102 = scmp.eq.s32.totalorder %s20, 0
      %p103 = por %p101, %p102
      %p104 = scmp.ne.s32.totalorder %s93, %s96
      %p105 = scmp.eq.s32.totalorder %s25, 3
      %p106 = por %p104, %p105
      %p107 = scmp.ne.s32.totalorder %s96, %s97
      %p108 = scmp.eq.s32.totalorder %s25, 0
      %p109 = por %p107, %p108
      %p110 = scmp.ne.s32.totalorder %s96, %s97
      %p111 = scmp.eq.s32.totalorder %s26, 3
      %p112 = por %p110, %p111
      %p114 = scmp.ne.s32.totalorder %s97, %s113
      %p115 = scmp.eq.s32.totalorder %s26, 0
      %p116 = por %p114, %p115
      %s118 = sadd.s32 %s117, 1
      %p121 = scmp.eq.s32.totalorder %s20, 3
      %p122 = scmp.ne.s32.totalorder %s117, %s119
      %p123 = scmp.eq.s32.totalorder %s20, 0
      %p124 = por %p122, %p123
      %p125 = scmp.ne.s32.totalorder %s117, %s119
      %p126 = scmp.eq.s32.totalorder %s25, 3
      %p127 = por %p125, %p126
      %p128 = scmp.ne.s32.totalorder %s119, %s120
      %p129 = scmp.eq.s32.totalorder %s25, 0
      %p130 = por %p128, %p129
      %p131 = scmp.ne.s32.totalorder %s119, %s120
      %p132 = scmp.eq.s32.totalorder %s26, 3
      %p133 = por %p131, %p132
      %p135 = scmp.ne.s32.totalorder %s120, %s134
      %p136 = scmp.eq.s32.totalorder %s26, 0
      %p137 = por %p135, %p136
      %s139 = sadd.s32 %s138, 1
      %p142 = scmp.eq.s32.totalorder %s20, 3
      %p143 = scmp.ne.s32.totalorder %s138, %s140
      %p144 = scmp.eq.s32.totalorder %s20, 0
      %p145 = por %p143, %p144
      %p146 = scmp.ne.s32.totalorder %s138, %s140
      %p147 = scmp.eq.s32.totalorder %s25, 3
      %p148 = por %p146, %p147
      %p149 = scmp.ne.s32.totalorder %s140, %s141
      %p150 = scmp.eq.s32.totalorder %s25, 0
      %p151 = por %p149, %p150
      %p152 = scmp.ne.s32.totalorder %s140, %s141
      %p153 = scmp.eq.s32.totalorder %s26, 3
      %p154 = por %p152, %p153
      %p156 = scmp.ne.s32.totalorder %s141, %s155
      %p157 = scmp.eq.s32.totalorder %s26, 0
      %p158 = por %p156, %p157
      %p159 = scmp.le.s32.totalorder 1, %s20
      %p160 = scmp.lt.s32.totalorder %s20, 5
      %p161 = pnand %p159, %p160
      %p162 = pneg %p161
      // Predicated region
      $region9: #{tpu_custom_call.1} parent=5 // pred_check
        _
      $region10: #{tpu_custom_call.1} parent=5 // pred_check_branch
        %164 = sbr.rel (%p161) target = $region12
      $region11: #{tpu_custom_call.1} parent=5 // pred_region
        %s165 = ssub.s32 %s20, 1
        // Predicated region
        $region13: #{tpu_custom_call.1} parent=11 // pred_check
          %p166 = pneg %p53
        $region14: #{tpu_custom_call.1} parent=11 // pred_check_branch
          %168 = sbr.rel (%p166) target = $region16
        $region15: #{tpu_custom_call.1} parent=11 // pred_region
          _
        $region16: #{tpu_custom_call.1} parent=11 // pred_fallthru
          _
      $region12: #{tpu_custom_call.1} parent=5 // pred_fallthru
        _
      %p169 = scmp.lt.s32.totalorder %s20, 4
      // Predicated region
      $region17: #{tpu_custom_call.1} parent=5 // pred_check
        %p170 = pneg %p169
      $region18: #{tpu_custom_call.1} parent=5 // pred_check_branch
        %172 = sbr.rel (%p170) target = $region20
      $region19: #{tpu_custom_call.1} parent=5 // pred_region
        // Predicated region
        $region21: #{tpu_custom_call.1} parent=19 // pred_check
          %p173 = pneg %p73
        $region22: #{tpu_custom_call.1} parent=19 // pred_check_branch
          %175 = sbr.rel (%p173) target = $region24
        $region23: #{tpu_custom_call.1} parent=19 // pred_region
          %s176 = sand.u32 %s63, 1
          %s177 = scalar_lea.sflag [#allocation13], %s176
          %s178 = sand.u32 %s63, 1
          %s179 = smul.addr %s178, 16
          %s180 = scalar_lea.vmem [#allocation12], %s179
          %s181 = smul.u32 2, %s27
          %s183 = ssub.s32 256, 256
          %184 = vsyncadd %s177, %s183
          %s185 = smul.addr %s181, 128
          %s186 = scalar_lea.hbm %s1, %s185
          %s187 = sshll.u32 %s180, 4
          %s188 = int_to_ptr.vmem [resolvable:$true] %s187
          %193 = dma.hbm_to_vmem [thread:$0]  %s186, 256, %s188, %s177, 128, 128, 8
        $region24: #{tpu_custom_call.1} parent=19 // pred_fallthru
          _
        // Predicated region
        $region25: #{tpu_custom_call.1} parent=19 // pred_check
          %p194 = pneg %p103
        $region26: #{tpu_custom_call.1} parent=19 // pred_check_branch
          %196 = sbr.rel (%p194) target = $region28
        $region27: #{tpu_custom_call.1} parent=19 // pred_region
          %s197 = sand.u32 %s93, 1
          %s198 = scalar_lea.sflag [#allocation16], %s197
          %s199 = sand.u32 %s93, 1
          %s200 = smul.addr %s199, 16
          %s201 = scalar_lea.vmem [#allocation15], %s200
          %p202 = scmp.eq.s32.totalorder %s27, 0
          %s203 = scalar_select %p202, %s28, 0
          %s204 = smul.u32 2, %s203
          %s206 = ssub.s32 256, 256
          %207 = vsyncadd %s198, %s206
          %s208 = smul.addr %s204, 128
          %s209 = scalar_lea.hbm %s2, %s208
          %s210 = sshll.u32 %s201, 4
          %s211 = int_to_ptr.vmem [resolvable:$true] %s210
          %216 = dma.hbm_to_vmem [thread:$0]  %s209, 256, %s211, %s198, 128, 128, 8
        $region28: #{tpu_custom_call.1} parent=19 // pred_fallthru
          _
      $region20: #{tpu_custom_call.1} parent=5 // pred_fallthru
        _
      %p217 = scmp.le.s32.totalorder 1, %s20
      %p218 = scmp.lt.s32.totalorder %s20, 5
      %p219 = pnand %p217, %p218
      %p220 = pneg %p219
      // Predicated region
      $region29: #{tpu_custom_call.1} parent=5 // pred_check
        _
      $region30: #{tpu_custom_call.1} parent=5 // pred_check_branch
        %222 = sbr.rel (%p219) target = $region32
      $region31: #{tpu_custom_call.1} parent=5 // pred_region
        %s223 = ssub.s32 %s20, 1
        %s224 = sand.u32 %s66, 1
        %s225 = scalar_lea.sflag [#allocation13], %s224
        %s226 = sand.u32 %s66, 1
        %s227 = smul.addr %s226, 16
        %s228 = scalar_lea.vmem [#allocation12], %s227
        // Predicated region
        $region33: #{tpu_custom_call.1} parent=31 // pred_check
          %p229 = pneg %p79
        $region34: #{tpu_custom_call.1} parent=31 // pred_check_branch
          %231 = sbr.rel (%p229) target = $region36
        $region35: #{tpu_custom_call.1} parent=31 // pred_region
          %232 = dma.done %s225, 256
        $region36: #{tpu_custom_call.1} parent=31 // pred_fallthru
          _
        %s233 = sand.u32 %s96, 1
        %s234 = scalar_lea.sflag [#allocation16], %s233
        %s235 = sand.u32 %s96, 1
        %s236 = smul.addr %s235, 16
        %s237 = scalar_lea.vmem [#allocation15], %s236
        // Predicated region
        $region37: #{tpu_custom_call.1} parent=31 // pred_check
          %p238 = pneg %p109
        $region38: #{tpu_custom_call.1} parent=31 // pred_check_branch
          %240 = sbr.rel (%p238) target = $region40
        $region39: #{tpu_custom_call.1} parent=31 // pred_region
          %241 = dma.done %s234, 256
        $region40: #{tpu_custom_call.1} parent=31 // pred_fallthru
          _
        %p242 = pneg %p53
        %p243 = pneg %p50
        %s244 = sand.u32 %s66, 1
        %s245 = scalar_lea.sflag [#allocation13], %s244
        %s246 = sand.u32 %s66, 1
        %s247 = smul.addr %s246, 16
        %s248 = scalar_lea.vmem [#allocation12], %s247
        %p249 = pneg %p79
        %p250 = pneg %p76
        %s251 = sand.u32 %s96, 1
        %s252 = scalar_lea.sflag [#allocation16], %s251
        %s253 = sand.u32 %s96, 1
        %s254 = smul.addr %s253, 16
        %s255 = scalar_lea.vmem [#allocation15], %s254
        %p256 = pneg %p109
        %p257 = pneg %p106
        %p258 = pneg %p130
        %p259 = pneg %p127
        %p260 = pneg %p151
        %p261 = pneg %p148
        %s262 = smul.u32 2, %s29
        %p263 = scmp.eq.s32.totalorder %s29, 0
        %s264 = scalar_select %p263, %s30, 0
        %s265 = smul.u32 2, %s264
        %s266 = sld [smem:[#allocation11]]
        %v267 = vstv %s266
        %v268 = vrcp.pop %v267
        %s269 = vtos %v268
        %p270 = scmp.eq.s32.totalorder %s29, 0
        %p271 = scmp.eq.s32.totalorder %s30, 0
        %p272 = pnand %p270, %p271
        %p273 = pneg %p272
        // Predicated region
        $region41: #{tpu_custom_call.1} parent=31 // pred_check
          _
        $region42: #{tpu_custom_call.1} parent=31 // pred_check_branch
          %275 = sbr.rel (%p272) target = $region44
        $region43: #{tpu_custom_call.1} parent=31 // pred_region
          %vm276 = vcmask 0
          %277 = vst.msk [vmem:[#allocation8] sm:$0x1] %vm276, 0.0
          %278 = vst.msk [vmem:[#allocation9] sm:$0x1] %vm276, 0.0
          %279 = vst.msk [vmem:[#allocation10] sm:$0x1] %vm276, 0.0
        $region44: #{tpu_custom_call.1} parent=31 // pred_fallthru
          _
        // Predicated region
        $region45: #{tpu_custom_call.1} parent=31 // pred_check
          %p280 = pneg %p271
        $region46: #{tpu_custom_call.1} parent=31 // pred_check_branch
          %282 = sbr.rel (%p280) target = $region48
        $region47: #{tpu_custom_call.1} parent=31 // pred_region
          %vm283 = vcmask 7168
          %284 = vst.msk [vmem:[#allocation4] sm:$0xff] %vm283, -inf
          %285 = vst.msk [vmem:[#allocation4 + $0x8] sm:$0xff] %vm283, -inf
          %286 = vst.msk [vmem:[#allocation5] sm:$0xff] %vm283, 0.0
          %287 = vst.msk [vmem:[#allocation5 + $0x8] sm:$0xff] %vm283, 0.0
          %v288 = vld [vmem:[%s228] sm:$0xff]
          %v289 = vld [vmem:[%s228 + $0x8] sm:$0xff]
          %v290 = vmul.f32 %v288, %v288
          %v291 = vmul.f32 %v289, %v289
          %292 = vadd.xlane.f32.xlu0 %v290
          %v293 = vpop.xlane.xlu0 %292
          %294 = vadd.xlane.f32.xlu0 %v291
          %v295 = vpop.xlane.xlu0 %294
          %v296 = vrsqrt.pop %v293
          %v297 = vrsqrt.pop %v295
          %v298 = vstv %s269
          %v299 = vmul.f32 %v296, %v298
          %v300 = vmul.f32 %v297, %v298
          %v301 = vmul.f32 %v288, %v299
          %v302 = vmul.f32 %v289, %v300
          %303 = vst [vmem:[#allocation2] sm:$0xff] %v301
          %304 = vst [vmem:[#allocation2 + $0x8] sm:$0xff] %v302
        $region48: #{tpu_custom_call.1} parent=31 // pred_fallthru
          _
        // Predicated region
        $region49: #{tpu_custom_call.1} parent=31 // pred_check
          %p305 = pneg %p270
        $region50: #{tpu_custom_call.1} parent=31 // pred_check_branch
          %307 = sbr.rel (%p305) target = $region52
        $region51: #{tpu_custom_call.1} parent=31 // pred_region
          %s308 = scalar_lea.vmem [#allocation6], %s30
          %vm309 = vcmask 122880
          %310 = vst.msk [vmem:[%s308] sm:$0x1] %vm309, -inf
          %s311 = scalar_lea.vmem [#allocation7], %s30
          %312 = vst.msk [vmem:[%s311] sm:$0x1] %vm309, 0.0
          %v313 = vld [vmem:[%s237] sm:$0xff]
          %v314 = vld [vmem:[%s237 + $0x8] sm:$0xff]
          %v315 = vmul.f32 %v313, %v313
          %v316 = vmul.f32 %v314, %v314
          %317 = vadd.xlane.f32.xlu0 %v315
          %v318 = vpop.xlane.xlu0 %317
          %319 = vadd.xlane.f32.xlu0 %v316
          %v320 = vpop.xlane.xlu0 %319
          %v321 = vrsqrt.pop %v318
          %v322 = vrsqrt.pop %v320
          %v323 = vmul.f32 %v313, %v321
          %v324 = vmul.f32 %v314, %v322
          %s325 = smul.u32 %s30, 16
          %s326 = scalar_lea.vmem [#allocation3], %s325
          %327 = vst [vmem:[%s326] sm:$0xff] %v323
          %328 = vst [vmem:[%s326 + $0x8] sm:$0xff] %v324
        $region52: #{tpu_custom_call.1} parent=31 // pred_fallthru
          _
        %s329 = smul.u32 %s30, 16
        %s330 = scalar_lea.vmem [#allocation3], %s329
        %v331 = vld [vmem:[%s330] sm:$0xff]
        %v332 = vld [vmem:[%s330 + $0x8] sm:$0xff]
        %v333 = vld [vmem:[#allocation2] sm:$0xff]
        %v334 = vld [vmem:[#allocation2 + $0x8] sm:$0xff]
        %335 = vmatprep.subr.mxu0 0.0
        %336 = vmatpush1.xpose.msra.mxu0 %v331
        %337 = vmatprep.subr.mxu0 0.0
        %338 = vmatpush1.xpose.msra.mxu0 %v332
        %339 = vmatprep.subr.mxu0 0.0
        %340 = vmatpush1.xpose.msra.mxu0 0.0
        %341 = vmatprep.subr.mxu0 0.0
        %342 = vmatpush1.xpose.msra.mxu0 0.0
        %343 = vmatprep.subr.mxu0 0.0
        %344 = vmatpush1.xpose.msra.mxu0 0.0
        %345 = vmatprep.subr.mxu0 0.0
        %346 = vmatpush1.xpose.msra.mxu0 0.0
        %347 = vmatprep.subr.mxu0 0.0
        %348 = vmatpush1.xpose.msra.mxu0 0.0
        %349 = vmatprep.subr.mxu0 0.0
        %350 = vmatpush1.xpose.msra.mxu0 0.0
        %351 = vmatprep.subr.mxu0 0.0
        %352 = vmatpush1.xpose.msra.mxu0 0.0
        %353 = vmatprep.subr.mxu0 0.0
        %354 = vmatpush1.xpose.msra.mxu0 0.0
        %355 = vmatprep.subr.mxu0 0.0
        %356 = vmatpush1.xpose.msra.mxu0 0.0
        %357 = vmatprep.subr.mxu0 0.0
        %358 = vmatpush1.xpose.msra.mxu0 0.0
        %359 = vmatprep.subr.mxu0 0.0
        %360 = vmatpush1.xpose.msra.mxu0 0.0
        %361 = vmatprep.subr.mxu0 0.0
        %362 = vmatpush1.xpose.msra.mxu0 0.0
        %363 = vmatprep.subr.mxu0 0.0
        %364 = vmatpush1.xpose.msra.mxu0 0.0
        %365 = vmatprep.subr.mxu0 0.0
        %366 = vmatpush1.xpose.msra.mxu0 0.0
        %367 = vmatprep.subr.mxu0 0.0
        %368 = vmatpush1.xpose.msra.mxu0 0.0
        %369 = vmatprep.subr.mxu0 0.0
        %370 = vmatpush1.xpose.msra.mxu0 0.0
        %371 = vmatprep.subr.mxu0 0.0
        %372 = vmatpush1.xpose.msra.mxu0 0.0
        %373 = vmatprep.subr.mxu0 0.0
        %374 = vmatpush1.xpose.msra.mxu0 0.0
        %375 = vmatprep.subr.mxu0 0.0
        %376 = vmatpush1.xpose.msra.mxu0 0.0
        %377 = vmatprep.subr.mxu0 0.0
        %378 = vmatpush1.xpose.msra.mxu0 0.0
        %379 = vmatprep.subr.mxu0 0.0
        %380 = vmatpush1.xpose.msra.mxu0 0.0
        %381 = vmatprep.subr.mxu0 0.0
        %382 = vmatpush1.xpose.msra.mxu0 0.0
        %383 = vmatprep.subr.mxu0 0.0
        %384 = vmatpush1.xpose.msra.mxu0 0.0
        %385 = vmatprep.subr.mxu0 0.0
        %386 = vmatpush1.xpose.msra.mxu0 0.0
        %387 = vmatprep.subr.mxu0 0.0
        %388 = vmatpush1.xpose.msra.mxu0 0.0
        %389 = vmatprep.subr.mxu0 0.0
        %390 = vmatpush1.xpose.msra.mxu0 0.0
        %391 = vmatprep.subr.mxu0 0.0
        %392 = vmatpush1.xpose.msra.mxu0 0.0
        %393 = vmatprep.subr.mxu0 0.0
        %394 = vmatpush1.xpose.msra.mxu0 0.0
        %395 = vmatprep.subr.mxu0 0.0
        %396 = vmatpush1.xpose.msra.mxu0 0.0
        %397 = vmatprep.subr.mxu0 0.0
        %398 = vmatpush1.xpose.msra.mxu0 0.0
        %399 = vmatprep.mubr.f32.mxu0 0.0
        %400 = vmatmul.mubr.f32.gmra.mrb[0].mxu0 %v333
        %v401 = vpop.f32.mrb[0].mxu0
        %v402 = vadd.f32 0.0, %v401
        %v403 = vpop.f32.mrb[0].mxu0
        %404 = vmatprep.mubr.f32.mxu0 0.0
        %405 = vmatmul.mubr.f32.gmra.mrb[0].mxu0 %v334
        %v406 = vpop.f32.mrb[0].mxu0
        %v407 = vadd.f32 0.0, %v406
        %v408 = vpop.f32.mrb[0].mxu0
        %409 = vdwg.mxu0
        %p410 = scmp.eq.s32.totalorder %s29, %s30
        // Predicated region
        $region53: #{tpu_custom_call.1} parent=31 // pred_check
          %p411 = pneg %p410
        $region54: #{tpu_custom_call.1} parent=31 // pred_check_branch
          %413 = sbr.rel (%p411) target = $region56
        $region55: #{tpu_custom_call.1} parent=31 // pred_region
          %v414 = vld [vmem:[#allocation10] sm:$0x1]
          %v415 = vmul.f32 %v333, %v331
          %v416 = vmul.f32 %v334, %v332
          %v417 = vadd.f32 %v415, %v416
          %418 = vadd.xlane.f32.xlu0 %v417
          %v419 = vpop.xlane.xlu0 %418
          %v420 = vrot.slane %v419, 4
          %v421 = vadd.f32 %v419, %v420
          %v422 = vrot.slane %v421, 2
          %v423 = vadd.f32 %v421, %v422
          %v424 = vrot.slane %v423, 1
          %v425 = vadd.f32 %v423, %v424
          %s426 = vtos %v425
          %v427 = vstv %s426
          %v428 = vadd.f32 %v414, %v427
          %vm429 = vcmask 0
          %430 = vst.msk [vmem:[#allocation10] sm:$0x1] %vm429, %v428
        $region56: #{tpu_custom_call.1} parent=31 // pred_fallthru
          _
        %v431 = vld [vmem:[#allocation4] sm:$0xff]
        %v432 = vld [vmem:[#allocation4 + $0x8] sm:$0xff]
        %vm433 = vcmask 130048
        %v434 = vsel %vm433, %v402, -inf
        %435 = vmax.xlane.f32.xlu0 %v434
        %v436 = vpop.xlane.xlu0 %435
        %v437 = vsel %vm433, %v407, -inf
        %438 = vmax.xlane.f32.xlu0 %v437
        %v439 = vpop.xlane.xlu0 %438
        %v440 = vmax.f32 %v431, %v436
        %v441 = vmax.f32 %v432, %v439
        %v442 = vsub.f32 %v431, %v440
        %v443 = vsub.f32 %v432, %v441
        %v444 = vmul.f32 %v442, 1.442695
        %v445 = vpow.pop %v444
        %v446 = vmul.f32 %v443, 1.442695
        %v447 = vpow.pop %v446
        %449 = vset.pattern.permute.xlu0 0
        %450 = vperm.xlu0 %449, %v440
        %v451 = vpop.permute.xlu0 %450
        %454 = vset.pattern.permute.xlu0 0
        %455 = vperm.xlu0 %454, %v441
        %v456 = vpop.permute.xlu0 %455
        %v458 = vsub.f32 %v402, %v451
        %v459 = vsub.f32 %v407, %v456
        %v460 = vmul.f32 %v458, 1.442695
        %v461 = vpow.pop %v460
        %v462 = vmul.f32 %v459, 1.442695
        %v463 = vpow.pop %v462
        %v464 = vld [vmem:[#allocation5] sm:$0xff]
        %v465 = vld [vmem:[#allocation5 + $0x8] sm:$0xff]
        %v466 = vmul.f32 %v445, %v464
        %v467 = vmul.f32 %v447, %v465
        %v468 = vsel %vm433, %v461, 0.0
        %469 = vadd.xlane.f32.xlu0 %v468
        %v470 = vpop.xlane.xlu0 %469
        %v471 = vsel %vm433, %v463, 0.0
        %472 = vadd.xlane.f32.xlu0 %v471
        %v473 = vpop.xlane.xlu0 %472
        %v474 = vadd.f32 %v466, %v470
        %v475 = vadd.f32 %v467, %v473
        %vm476 = vcmask 7168
        %477 = vst.msk [vmem:[#allocation4] sm:$0xff] %vm476, %v440
        %478 = vst.msk [vmem:[#allocation4 + $0x8] sm:$0xff] %vm476, %v441
        %479 = vst.msk [vmem:[#allocation5] sm:$0xff] %vm476, %v474
        %480 = vst.msk [vmem:[#allocation5 + $0x8] sm:$0xff] %vm476, %v475
        %v481 = vsel %vm476, %v440, -inf
        %v482 = vsel %vm476, %v441, -inf
        %v483 = vmax.f32 %v481, %v482
        %484 = vmax.xlane.f32.xlu0 %v483
        %v485 = vpop.xlane.xlu0 %484
        %v486 = vrot.slane %v485, 4
        %v487 = vmax.f32 %v485, %v486
        %v488 = vrot.slane %v487, 2
        %v489 = vmax.f32 %v487, %v488
        %v490 = vrot.slane %v489, 1
        %v491 = vmax.f32 %v489, %v490
        %s492 = vtos %v491
        %v493 = vstv %s492
        %v494 = vsub.f32 %v440, %v493
        %v495 = vsub.f32 %v441, %v493
        %v496 = vmul.f32 %v494, 1.442695
        %v497 = vpow.pop %v496
        %v498 = vmul.f32 %v495, 1.442695
        %v499 = vpow.pop %v498
        %501 = vset.pattern.permute.xlu0 0
        %502 = vperm.xlu0 %501, %v497
        %v503 = vpop.permute.xlu0 %502
        %506 = vset.pattern.permute.xlu0 0
        %507 = vperm.xlu0 %506, %v499
        %v508 = vpop.permute.xlu0 %507
        %v510 = vmul.f32 %v461, %v503
        %v511 = vmul.f32 %v463, %v508
        %v512 = vsel %vm433, %v510, 0.0
        %v513 = vsel %vm433, %v511, 0.0
        %v514 = vadd.f32 %v512, %v513
        %v515 = vrot.slane %v514, 4
        %v516 = vadd.f32 %v514, %v515
        %v517 = vrot.slane %v516, 2
        %v518 = vadd.f32 %v516, %v517
        %v519 = vrot.slane %v518, 1
        %v520 = vadd.f32 %v518, %v519
        %s521 = scalar_lea.vmem [#allocation6], %s30
        %v522 = vld [vmem:[%s521] sm:$0x1]
        %s523 = scalar_lea.vmem [#allocation7], %s30
        %v524 = vld [vmem:[%s523] sm:$0x1]
        %v525 = vmax.f32 %v522, %v493
        %v526 = vsub.f32 %v522, %v525
        %v527 = vmul.f32 %v526, 1.442695
        %v528 = vpow.pop %v527
        %v529 = vmul.f32 %v524, %v528
        %v530 = vsub.f32 %v493, %v525
        %v531 = vmul.f32 %v530, 1.442695
        %v532 = vpow.pop %v531
        %v533 = vmul.f32 %v520, %v532
        %v534 = vadd.f32 %v529, %v533
        %vm535 = vcmask 122880
        %536 = vst.msk [vmem:[%s521] sm:$0x1] %vm535, %v525
        %537 = vst.msk [vmem:[%s523] sm:$0x1] %vm535, %v534
        %p538 = scmp.eq.s32.totalorder %s30, 1
        // Predicated region
        $region57: #{tpu_custom_call.1} parent=31 // pred_check
          %p539 = pneg %p538
        $region58: #{tpu_custom_call.1} parent=31 // pred_check_branch
          %541 = sbr.rel (%p539) target = $region60
        $region59: #{tpu_custom_call.1} parent=31 // pred_region
          %v542 = vld [vmem:[#allocation8] sm:$0x1]
          %v543 = vlog2.pop %v474
          %v544 = vmul.f32 %v543, 0.6931472
          %v545 = vlog2.pop %v475
          %v546 = vmul.f32 %v545, 0.6931472
          %v547 = vadd.f32 %v440, %v544
          %v548 = vadd.f32 %v441, %v546
          %v549 = vsel %vm476, %v547, 0.0
          %v550 = vsel %vm476, %v548, 0.0
          %v551 = vadd.f32 %v549, %v550
          %552 = vadd.xlane.f32.xlu0 %v551
          %v553 = vpop.xlane.xlu0 %552
          %v554 = vrot.slane %v553, 4
          %v555 = vadd.f32 %v553, %v554
          %v556 = vrot.slane %v555, 2
          %v557 = vadd.f32 %v555, %v556
          %v558 = vrot.slane %v557, 1
          %v559 = vadd.f32 %v557, %v558
          %s560 = vtos %v559
          %v561 = vstv %s560
          %v562 = vadd.f32 %v542, %v561
          %vm563 = vcmask 0
          %564 = vst.msk [vmem:[#allocation8] sm:$0x1] %vm563, %v562
        $region60: #{tpu_custom_call.1} parent=31 // pred_fallthru
          _
        %p565 = scmp.eq.s32.totalorder %s29, 1
        // Predicated region
        $region61: #{tpu_custom_call.1} parent=31 // pred_check
          %p566 = pneg %p565
        $region62: #{tpu_custom_call.1} parent=31 // pred_check_branch
          %568 = sbr.rel (%p566) target = $region64
        $region63: #{tpu_custom_call.1} parent=31 // pred_region
          %v569 = vld [vmem:[#allocation9] sm:$0x1]
          %v570 = vlog2.pop %v534
          %v571 = vmul.f32 %v570, 0.6931472
          %v572 = vadd.f32 %v525, %v571
          %v573 = vsel %vm535, %v572, 0.0
          %574 = vadd.xlane.f32.xlu0 %v573
          %v575 = vpop.xlane.xlu0 %574
          %v576 = vrot.slane %v575, 4
          %v577 = vadd.f32 %v575, %v576
          %v578 = vrot.slane %v577, 2
          %v579 = vadd.f32 %v577, %v578
          %v580 = vrot.slane %v579, 1
          %v581 = vadd.f32 %v579, %v580
          %s582 = vtos %v581
          %v583 = vstv %s582
          %v584 = vadd.f32 %v569, %v583
          %vm585 = vcmask 0
          %586 = vst.msk [vmem:[#allocation9] sm:$0x1] %vm585, %v584
        $region64: #{tpu_custom_call.1} parent=31 // pred_fallthru
          _
        %p587 = pnand %p565, %p538
        %p588 = pneg %p587
        // Predicated region
        $region65: #{tpu_custom_call.1} parent=31 // pred_check
          _
        $region66: #{tpu_custom_call.1} parent=31 // pred_check_branch
          %590 = sbr.rel (%p587) target = $region68
        $region67: #{tpu_custom_call.1} parent=31 // pred_region
          %v591 = vld [vmem:[#allocation8] sm:$0x1]
          %v592 = vld [vmem:[#allocation10] sm:$0x1]
          %v593 = vsub.f32 %v591, %v592
          %v594 = vmul.f32 %v593, 0.03125
          %vm595 = vcmask 0
          %596 = vst.msk [vmem:[#allocation17] sm:$0x1] %vm595, %v594
          %v597 = vld [vmem:[#allocation9] sm:$0x1]
          %v598 = vld [vmem:[#allocation10] sm:$0x1]
          %v599 = vsub.f32 %v597, %v598
          %v600 = vmul.f32 %v599, 0.03125
          %601 = vst.msk [vmem:[#allocation18] sm:$0x1] %vm595, %v600
        $region68: #{tpu_custom_call.1} parent=31 // pred_fallthru
          _
        // Predicated region
        $region69: #{tpu_custom_call.1} parent=31 // pred_check
          %p602 = pneg %p127
        $region70: #{tpu_custom_call.1} parent=31 // pred_check_branch
          %604 = sbr.rel (%p602) target = $region72
        $region71: #{tpu_custom_call.1} parent=31 // pred_region
          %s606 = ssub.s32 16, 16
          %607 = vsyncadd [#allocation14], %s606
          %s609 = sshll.u32 [#allocation17], 4
          %s610 = int_to_ptr.vmem [resolvable:$true] %s609
          %612 = dma.vmem_to_hbm [thread:$0]  %s610, 16, %s3, [#allocation14]
        $region72: #{tpu_custom_call.1} parent=31 // pred_fallthru
          _
        // Predicated region
        $region73: #{tpu_custom_call.1} parent=31 // pred_check
          %p613 = pneg %p148
        $region74: #{tpu_custom_call.1} parent=31 // pred_check_branch
          %615 = sbr.rel (%p613) target = $region76
        $region75: #{tpu_custom_call.1} parent=31 // pred_region
          %s617 = ssub.s32 16, 16
          %618 = vsyncadd [#allocation19], %s617
          %s620 = sshll.u32 [#allocation18], 4
          %s621 = int_to_ptr.vmem [resolvable:$true] %s620
          %623 = dma.vmem_to_hbm [thread:$0]  %s621, 16, %s4, [#allocation19]
        $region76: #{tpu_custom_call.1} parent=31 // pred_fallthru
          _
        // Predicated region
        $region77: #{tpu_custom_call.1} parent=31 // pred_check
          %p624 = pneg %p127
        $region78: #{tpu_custom_call.1} parent=31 // pred_check_branch
          %626 = sbr.rel (%p624) target = $region80
        $region79: #{tpu_custom_call.1} parent=31 // pred_region
          %627 = dma.done [#allocation14], 16
        $region80: #{tpu_custom_call.1} parent=31 // pred_fallthru
          _
        // Predicated region
        $region81: #{tpu_custom_call.1} parent=31 // pred_check
          %p628 = pneg %p148
        $region82: #{tpu_custom_call.1} parent=31 // pred_check_branch
          %630 = sbr.rel (%p628) target = $region84
        $region83: #{tpu_custom_call.1} parent=31 // pred_region
          %631 = dma.done [#allocation19], 16
        $region84: #{tpu_custom_call.1} parent=31 // pred_fallthru
          _
      $region32: #{tpu_custom_call.1} parent=5 // pred_fallthru
        _
      %p632 = scmp.le.s32.totalorder 2, %s20
      // Predicated region
      $region85: #{tpu_custom_call.1} parent=5 // pred_check
        %p633 = pneg %p632
      $region86: #{tpu_custom_call.1} parent=5 // pred_check_branch
        %635 = sbr.rel (%p633) target = $region88
      $region87: #{tpu_custom_call.1} parent=5 // pred_region
        %s636 = ssub.s32 %s20, 2
      $region88: #{tpu_custom_call.1} parent=5 // pred_fallthru
        _
    $region6: #{tpu_custom_call.1} parent=1 // loop_footer
      %s24 = sadd.s32 1, %s20
    $region7: #{tpu_custom_call.1} parent=1 // loop_footer_branch
      %19 = sbr.rel target = $region3
    $region8: #{tpu_custom_call.1} parent=1 // loop_exit
      _
    %637 = vsyncpa [#allocation13], 1
    %s638 = scalar_lea.sflag [#allocation13], 1
    %639 = vsyncpa %s638, 1
    %640 = vsyncpa [#allocation16], 1
    %s641 = scalar_lea.sflag [#allocation16], 1
    %642 = vsyncpa %s641, 1
    %643 = vsyncpa [#allocation14], 1
    %s644 = scalar_lea.sflag [#allocation14], 1
    %645 = vsyncpa %s644, 1
    %646 = vsyncpa [#allocation19], 1

</llo_original>
